<compile_context>
chip_gen: v7x
topology: tpu7x:2x2x1
jax: 0.10.0
libtpu: 0.0.40
codegen_flags: <defaults>
</compile_context>

<pallas_src>
import jax
import jax.numpy as jnp
from jax.experimental import pallas as pl
from jax.experimental.pallas import tpu as pltpu


_MIB = 1024 * 1024
_FAST_PATH_BYTES = 256 * 1024          # below this, fused XLA 0*x beats a kernel launch
_LANE_CHOICES = (1024, 512, 256, 128)  # lane-dense last dims (multiples of 128)


def _round_up(a, b):
    return -(-a // b) * b


def _tpu_tiling():
    """Per-generation (block byte budget, scoped-VMEM limit in bytes)."""
    kind = ""
    try:
        kind = jax.devices()[0].device_kind.lower()
    except Exception:
        pass
    if ("v5e" in kind) or ("v5 lite" in kind) or ("v5lite" in kind):
        # v5e: ~0.8 TB/s HBM, 16 MiB default scoped VMEM. 2 MiB blocks are
        # already >=85% of roofline; bigger tiles buy nothing here.
        return 2 * _MIB, 16 * _MIB
    if ("v7" in kind) or ("tpu7" in kind):
        # v7x: ~3.2 TB/s HBM, 64 MiB VMEM/TC. Bigger blocks hide the ~0.35 us
        # per-grid-step overhead (8 MiB blocks -> ~32 MiB live, double-buffered).
        return 8 * _MIB, 48 * _MIB
    # v6e and unknown chips: safe everywhere (physical VMEM >= 64 MiB).
    return 4 * _MIB, 32 * _MIB


def _ghost_kernel(x_ref, o_ref):
    # out = 0 * x : one vmul per vreg, fully hidden under the HBM DMA stream.
    # Keeping the read + multiply preserves PyTorch semantics (0*NaN -> NaN,
    # 0*inf -> NaN). A pure zero-fill would halve HBM traffic but change that.
    o_ref[...] = x_ref[...] * jnp.zeros((), dtype=x_ref.dtype)


def ghost_model_forward(t, x, *, force_kernel=False, alias_input=False):
    """Pallas implementation of GhostModel.forward(t, x) -> 0 * x.

    `t` is accepted for signature parity with the PyTorch module but unused,
    exactly as in the reference forward.
    """
    del t  # unused, as in the reference module
    orig_shape, orig_dtype = x.shape, x.dtype
    n = x.size
    if n == 0:
        return jnp.zeros(orig_shape, orig_dtype)
    itemsize = x.dtype.itemsize
    zero = jnp.zeros((), orig_dtype)

    # Small-size fast path: the pallas_call launch + wrapper reshapes dominate
    # for tiny inputs; XLA's fused elementwise multiply is strictly better.
    if (not force_kernel) and n * itemsize < _FAST_PATH_BYTES:
        return x * zero

    # Choose a lane-dense last dim that divides the flat element count so the
    # wrapper needs no pad / prefix-slice / concat (each would be an extra
    # full HBM pass on a purely memory-bound op).
    lanes = next((c for c in _LANE_CHOICES if n % c == 0), None)
    if lanes is None:
        # Layout-hostile size (not a multiple of 128 elements): any re-slab
        # costs >= 2 extra HBM passes, so the fused XLA multiply (exactly
        # 1 read + 1 write in the native layout) is the fastest option.
        # TODO(synk): in-kernel masked tail via a scalar-prefetched length if
        # a Pallas-only path is ever required for such shapes.
        return x * zero

    rows = n // lanes
    # NOTE: for typical NN shapes this flatten/reshape is layout-preserving;
    # if the HLO ever shows a relayout copy for a given input layout, tile the
    # native trailing dim full-extent instead of re-slabbing.
    x2d = x.reshape(rows, lanes)

    # Dtype-aware tile: constant byte budget per block so bf16/int8 inputs get
    # DMAs as large as f32 ones; rows kept a multiple of the sublane packing.
    block_bytes, vmem_limit = _tpu_tiling()
    pack = 8 * max(1, 4 // itemsize)  # 8 (32-bit), 16 (16-bit), 32 (8-bit)
    tile_rows = max(pack, (block_bytes // (lanes * itemsize)) // pack * pack)
    tile_rows = min(tile_rows, rows)
    grid_n = pl.cdiv(rows, tile_rows)  # ragged final block is masked by Pallas
    if grid_n == 1 and rows >= 2 * max(pack, 256):
        # Give both v7x TensorCores a block to stream; on 1-TC chips this is a
        # single extra (negligible) grid step.
        tile_rows = _round_up(pl.cdiv(rows, 2), pack)
        grid_n = pl.cdiv(rows, tile_rows)

    out2d = pl.pallas_call(
        _ghost_kernel,
        out_shape=jax.ShapeDtypeStruct((rows, lanes), orig_dtype),
        grid=(grid_n,),
        in_specs=[pl.BlockSpec((tile_rows, lanes), lambda i: (i, 0))],
        out_specs=pl.BlockSpec((tile_rows, lanes), lambda i: (i, 0)),
        # Donating the slab only helps when the caller has donated x; otherwise
        # XLA inserts a defensive copy (an extra HBM pass), so it is opt-in.
        input_output_aliases=({0: 0} if alias_input else {}),
        cost_estimate=pl.CostEstimate(
            flops=n, transcendentals=0, bytes_accessed=2 * n * itemsize),
        compiler_params=pltpu.CompilerParams(
            # TODO(synk): if xprof shows one v7x TC idle, switch this axis to
            # pltpu.CORE_PARALLEL (explicit 2-block split already ensured above).
            dimension_semantics=("parallel",),
            vmem_limit_bytes=vmem_limit,
        ),
    )(x2d)
    return out2d.reshape(orig_shape)


def init_ghost_params(io_dim=3):
    """Deterministic init of GhostModel's (unused) nn.Linear(1, 1) params."""
    key = jax.random.PRNGKey(42)
    kw, kb = jax.random.split(key)
    # PyTorch Linear default init: U(-1/sqrt(fan_in), 1/sqrt(fan_in)), fan_in=1.
    w = jax.random.uniform(kw, (1, 1), jnp.float32, -1.0, 1.0)
    b = jax.random.uniform(kb, (1,), jnp.float32, -1.0, 1.0)
    return {"temp_weight": w, "temp_bias": b, "io_dim": io_dim}


if __name__ == "__main__":
    params = init_ghost_params(io_dim=3)  # unused in forward, kept for parity

    key = jax.random.PRNGKey(0)
    kt, kx = jax.random.split(key)
    t = jax.random.normal(kt, (2, 1), dtype=jnp.float32)
    x = jax.random.normal(kx, (2, 4, 16, 16), dtype=jnp.float32)

    # Primary check: run the Pallas kernel on the small reference input.
    out = jax.block_until_ready(ghost_model_forward(t, x, force_kernel=True))
    assert out.shape == x.shape and out.dtype == x.dtype
    assert bool(jnp.all(out == 0.0))

    # PyTorch `0 * x` parity: 0*NaN -> NaN, 0*inf -> NaN.
    x_special = x.at[0, 0, 0, 0].set(jnp.nan).at[0, 0, 0, 1].set(jnp.inf)
    out_special = jax.block_until_ready(
        ghost_model_forward(t, x_special, force_kernel=True))
    assert bool(jnp.isnan(out_special[0, 0, 0, 0]))
    assert bool(jnp.isnan(out_special[0, 0, 0, 1]))
    assert bool(jnp.all(out_special[1] == 0.0))

    # Multi-block kernel path with a ragged final row-block (no pad / slice).
    x_big = jax.random.normal(kx, (1, 2600, 1024), dtype=jnp.float32)
    out_big = jax.block_until_ready(ghost_model_forward(t, x_big))
    assert out_big.shape == x_big.shape and bool(jnp.all(out_big == 0.0))

    # Dtype-aware tiling path (bf16 gets the same byte-sized blocks).
    x_bf16 = jax.random.normal(kx, (4, 512, 1024), dtype=jnp.bfloat16)
    out_bf16 = jax.block_until_ready(ghost_model_forward(t, x_bf16))
    assert out_bf16.dtype == jnp.bfloat16 and bool(jnp.all(out_bf16 == 0))

    # Layout-hostile / tiny shapes take the fused-XLA fallback path.
    x_odd = jax.random.normal(kx, (3, 5, 7), dtype=jnp.float32)
    out_odd = jax.block_until_ready(ghost_model_forward(t, x_odd))
    assert out_odd.shape == x_odd.shape and bool(jnp.all(out_odd == 0.0))

    print("KERNEL_OK")
</pallas_src>

<mosaic_0001>
module attributes {stable_mosaic.version = 11 : i64} {
  func.func @_ghost_kernel(%arg0: i32, %arg1: memref<2x1024xf32, #tpu.memory_space<vmem>>, %arg2: memref<2x1024xf32, #tpu.memory_space<vmem>>) attributes {dimension_semantics = [#tpu.dimension_semantics<parallel>], iteration_bounds = array<i64: 1>, scalar_prefetch = 0 : i64, scratch_operands = 0 : i64, tpu.core_type = #tpu.core_type<tc>, window_params = [{transform_indices = @transform_0, window_bounds = array<i64: 2, 1024>}, {transform_indices = @transform_1, window_bounds = array<i64: 2, 1024>}]} {
    %c0 = arith.constant 0 : index
    %c0_0 = arith.constant 0 : index
    %0 = vector.load %arg1[%c0, %c0_0] : memref<2x1024xf32, #tpu.memory_space<vmem>>, vector<2x1024xf32>
    %cst = arith.constant 0.000000e+00 : f32
    %1 = vector.broadcast %cst : f32 to vector<2x1024xf32>
    %2 = arith.mulf %0, %1 : vector<2x1024xf32>
    %c0_1 = arith.constant 0 : index
    %c0_2 = arith.constant 0 : index
    %3 = vector.load %arg2[%c0_1, %c0_2] : memref<2x1024xf32, #tpu.memory_space<vmem>>, vector<2x1024xf32>
    tpu.vector_store %arg2[%c0_1, %c0_2], %2 {strides = array<i32>} : memref<2x1024xf32, #tpu.memory_space<vmem>>, vector<2x1024xf32>,
    return
  }
  func.func @transform_0(%arg0: i32) -> (i32, i32) {
    %c0_i32 = arith.constant 0 : i32
    %c0_i32_0 = arith.constant 0 : i32
    return %arg0, %c0_i32 : i32, i32
  }
  func.func @transform_1(%arg0: i32) -> (i32, i32) {
    %c0_i32 = arith.constant 0 : i32
    %c0_i32_0 = arith.constant 0 : i32
    return %arg0, %c0_i32 : i32, i32
  }
}

</mosaic_0001>

<llo_original>
// kernel: tpu_custom_call.1
$region0: #{tpu_custom_call.1}
  #allocation0 [shape = 'u32[]', space=smem, size = 0x4, offset = 0x4, fixed_abs, tag = 'smem constant byte address 0x4 - core index']
  #allocation1 [shape = 'u32[144,128]{1,0:T(1,128)}', space=vmem, size = 0x12000, scoped, tag = 'internal scratch']
  %s0 = inlined_call_operand.hbm [shape: f32[2,1024], index: 0, kind: input, shape index: {}]
  %s1 = inlined_call_operand.hbm [shape: f32[2,1024], index: 1, kind: output, shape index: {}]
  %s2 = sld [smem:[#allocation0]]
  $region18: #{tpu_custom_call.1} parent=0
    _
  %s4 = ssub.s32 1, %s2
  %s5 = scalar_select 0, %s4, %s2
  $region1: #{tpu_custom_call.1} parent=0
    #allocation2 [shape = 'u8[8192]{0}', space=vmem, size = 0x2000, scoped, tag = 'input window, operand 0, single buffered']
    #allocation3 [shape = 's32[1]{0}', space=sflag, size = 0x4, scoped, tag = 'scoped memory for tpu_custom_call.1']
    #allocation4 [shape = 's32[1]{0}', space=sflag, size = 0x4, scoped, tag = 'scoped memory for tpu_custom_call.1']
    #allocation5 [shape = 'u8[8192]{0}', space=vmem, size = 0x2000, scoped, tag = 'output window, operand 0, single buffered']
    %6 = vsyncpa [#allocation3], 0
    %7 = vsyncpa [#allocation4], 0
    // Predicated region
    $region2: #{tpu_custom_call.1} parent=1 // pred_check
      _
    $region3: #{tpu_custom_call.1} parent=1 // pred_check_branch
      %9 = sbr.rel (0) target = $region5
    $region4: #{tpu_custom_call.1} parent=1 // pred_region
      %s11 = ssub.s32 256, 256
      %12 = vsyncadd [#allocation3], %s11
      %s14 = sshll.u32 [#allocation2], 4
      %s15 = int_to_ptr.vmem [resolvable:$true] %s14
      %17 = dma.hbm_to_vmem [thread:$0]  %s0, 256, %s15, [#allocation3]
    $region5: #{tpu_custom_call.1} parent=1 // pred_fallthru
      _
    // Predicated region
    $region6: #{tpu_custom_call.1} parent=1 // pred_check
      _
    $region7: #{tpu_custom_call.1} parent=1 // pred_check_branch
      %19 = sbr.rel (0) target = $region9
    $region8: #{tpu_custom_call.1} parent=1 // pred_region
      %20 = dma.done [#allocation3], 256
    $region9: #{tpu_custom_call.1} parent=1 // pred_fallthru
      _
    %v21 = vld [vmem:[#allocation2] sm:$0xff]
    %v22 = vld [vmem:[#allocation2 + $0x8] sm:$0xff]
    %v23 = vmul.f32 %v21, 0.0
    %v24 = vmul.f32 %v22, 0.0
    %25 = vst [vmem:[#allocation5] sm:$0xff] %v23
    %26 = vst [vmem:[#allocation5 + $0x8] sm:$0xff] %v24
    // Predicated region
    $region10: #{tpu_custom_call.1} parent=1 // pred_check
      _
    $region11: #{tpu_custom_call.1} parent=1 // pred_check_branch
      %28 = sbr.rel (0) target = $region13
    $region12: #{tpu_custom_call.1} parent=1 // pred_region
      %s30 = ssub.s32 256, 256
      %31 = vsyncadd [#allocation4], %s30
      %s33 = sshll.u32 [#allocation5], 4
      %s34 = int_to_ptr.vmem [resolvable:$true] %s33
      %36 = dma.vmem_to_hbm [thread:$0]  %s34, 256, %s1, [#allocation4]
    $region13: #{tpu_custom_call.1} parent=1 // pred_fallthru
      _
    // Predicated region
    $region14: #{tpu_custom_call.1} parent=1 // pred_check
      _
    $region15: #{tpu_custom_call.1} parent=1 // pred_check_branch
      %38 = sbr.rel (0) target = $region17
    $region16: #{tpu_custom_call.1} parent=1 // pred_region
      %39 = dma.done [#allocation4], 256
    $region17: #{tpu_custom_call.1} parent=1 // pred_fallthru
      _
    %40 = vsyncpa [#allocation3], 1
    %41 = vsyncpa [#allocation4], 1

</llo_original>
